<compile_context>
chip_gen: v6e
topology: v6e:2x2x1
jax: 0.10.0
libtpu: 0.0.40
codegen_flags: <defaults>
</compile_context>

<pallas_src>
import functools
import math

import jax
import jax.numpy as jnp
from jax.experimental import pallas as pl
from jax.experimental.pallas import tpu as pltpu


def _round_up(x, m):
    return (x + m - 1) // m * m


def _cdiv(a, b):
    return (a + b - 1) // b


def _vmem_capacity_bytes():
    """Physical VMEM per TensorCore; conservative fallback if unknown."""
    try:
        cap = int(pltpu.get_tpu_info().vmem_capacity_bytes)
        if cap > 0:
            return cap
    except Exception:
        pass
    try:
        kind = jax.devices()[0].device_kind.lower()
        if "v5" in kind or "v6" in kind:
            return 128 << 20
    except Exception:
        pass
    return 64 << 20  # conservative (v7x-sized)


_VMEM_CAP = _vmem_capacity_bytes()

# Generation-specific default tiles (bigger tiles where VMEM allows).
if _VMEM_CAP >= (96 << 20):          # v5e / v6e: 128 MiB VMEM
    _TM_DEF, _TN_DEF, _TK_DEF = 512, 1024, 1024
else:                                # v7x: 64 MiB VMEM
    _TM_DEF, _TN_DEF, _TK_DEF = 256, 1024, 1024

_INV_SQRT2 = 0.7071067811865475


def _gelu_erf(y):
    # Exact GELU — matches torch.nn.GELU() default (erf formulation).
    return 0.5 * y * (1.0 + jax.lax.erf(y * jnp.float32(_INV_SQRT2)))


def _kernel_f32_out(x_ref, w_ref, b_ref, o_ref):
    """f32 output: accumulate directly into the revisited output block."""
    k = pl.program_id(2)
    prod = jnp.dot(x_ref[...], w_ref[...], preferred_element_type=jnp.float32)

    @pl.when(k == 0)
    def _first():
        o_ref[...] = prod

    @pl.when(k > 0)
    def _rest():
        o_ref[...] += prod

    @pl.when(k == pl.num_programs(2) - 1)
    def _finalize():
        y = o_ref[...] + b_ref[...]
        o_ref[...] = _gelu_erf(y)


def _kernel_cast_out(x_ref, w_ref, b_ref, o_ref, acc_ref):
    """Non-f32 output: f32 accumulator scratch, cast in the epilogue."""
    k = pl.program_id(2)
    prod = jnp.dot(x_ref[...], w_ref[...], preferred_element_type=jnp.float32)

    @pl.when(k == 0)
    def _first():
        acc_ref[...] = prod

    @pl.when(k > 0)
    def _rest():
        acc_ref[...] += prod

    @pl.when(k == pl.num_programs(2) - 1)
    def _finalize():
        y = acc_ref[...] + b_ref[...]
        o_ref[...] = _gelu_erf(y).astype(o_ref.dtype)


def _fit_tile(dim, max_tile, align):
    """Balanced, `align`-multiple tile <= max_tile that minimizes padding."""
    max_tile = max(align, min(max_tile, _round_up(dim, align)))
    n = _cdiv(dim, max_tile)
    return _round_up(_cdiv(dim, n), align)


@functools.partial(jax.jit, static_argnames=("tm", "tn", "tk", "bf16_matmul"))
def intermediate_forward(x, weight_t, bias, *, tm=None, tn=None, tk=None,
                         bf16_matmul=True):
    """x: (..., H), weight_t: (H, I) (= W^T of nn.Linear), bias: (I,) -> (..., I)."""
    *lead, H = x.shape
    I = weight_t.shape[1]
    M = 1
    for d in lead:
        M *= d
    out_dtype = x.dtype

    x2d = x.reshape(M, H)
    w = weight_t
    if bf16_matmul:
        if x2d.dtype != jnp.bfloat16:
            x2d = x2d.astype(jnp.bfloat16)
        if w.dtype != jnp.bfloat16:
            # Pass a pre-cast bf16 weight to skip this per-call HBM pass.
            w = w.astype(jnp.bfloat16)
    else:
        x2d = x2d.astype(jnp.float32)
        w = w.astype(jnp.float32)
    b2d = bias.astype(jnp.float32).reshape(1, I)

    # Tile selection: balanced, (8/16,128)-aligned, generation-sized defaults.
    m_align = 16 if bf16_matmul else 8
    tm = _fit_tile(M, tm if tm else _TM_DEF, m_align)
    tn = _fit_tile(I, tn if tn else _TN_DEF, 128)
    tk = _fit_tile(H, tk if tk else _TK_DEF, 128)

    Mp = _round_up(M, tm)
    # Guarantee >=2 tiles along a parallel axis so both v7x TensorCores work.
    if (Mp // tm) == 1 and _cdiv(I, tn) == 1 and I > 128:
        tn = _round_up(_cdiv(I, 2), 128)
    Ip = _round_up(I, tn)
    Hp = _round_up(H, tk)

    # Pad only when needed (common aligned transformer shapes pad nothing).
    if (Mp, Hp) != (M, H):
        x2d = jnp.pad(x2d, ((0, Mp - M), (0, Hp - H)))
    if (Hp, Ip) != (H, I):
        w = jnp.pad(w, ((0, Hp - H), (0, Ip - I)))
    if Ip != I:
        b2d = jnp.pad(b2d, ((0, 0), (0, Ip - I)))

    f32_out = jnp.dtype(out_dtype) == jnp.dtype(jnp.float32)
    kernel = _kernel_f32_out if f32_out else _kernel_cast_out
    scratch = () if f32_out else (pltpu.VMEM((tm, tn), jnp.float32),)

    # VMEM budget: double-buffered inputs/bias/outputs (+ f32 scratch if any),
    # headroom added, capped >=16 MiB below the physical per-core capacity.
    in_item = x2d.dtype.itemsize
    out_item = jnp.dtype(out_dtype).itemsize
    vmem_need = (2 * (tm * tk * in_item + tk * tn * in_item + tn * 4)
                 + 2 * tm * tn * out_item
                 + (0 if f32_out else tm * tn * 4))
    vmem_limit = max(vmem_need + (16 << 20), 32 << 20)
    vmem_limit = min(vmem_limit, _VMEM_CAP - (16 << 20))
    vmem_limit = int(max(vmem_limit, vmem_need + (4 << 20)))

    grid = (Mp // tm, Ip // tn, Hp // tk)

    out2d = pl.pallas_call(
        kernel,
        out_shape=jax.ShapeDtypeStruct((Mp, Ip), out_dtype),
        grid_spec=pltpu.PrefetchScalarGridSpec(
            num_scalar_prefetch=0,
            grid=grid,
            in_specs=[
                pl.BlockSpec((tm, tk), lambda i, j, k: (i, k)),   # activations
                pl.BlockSpec((tk, tn), lambda i, j, k: (k, j)),   # weight tile
                pl.BlockSpec((1, tn), lambda i, j, k: (0, j)),    # bias tile
            ],
            out_specs=pl.BlockSpec((tm, tn), lambda i, j, k: (i, j)),
            scratch_shapes=scratch,
        ),
        compiler_params=pltpu.CompilerParams(
            dimension_semantics=("parallel", "parallel", "arbitrary"),
            vmem_limit_bytes=vmem_limit,
        ),
    )(x2d, w, b2d)

    if (Mp, Ip) != (M, I):
        out2d = out2d[:M, :I]
    return out2d.reshape(*lead, I)


def _reference(x, weight_t, bias):
    y = jnp.einsum("...h,hi->...i", x, weight_t) + bias
    return 0.5 * y * (1.0 + jax.lax.erf(y / jnp.sqrt(2.0)))


if __name__ == "__main__":
    key = jax.random.PRNGKey(0)

    # --- Test 1: small module shapes (batch=2, seq=8, h_size=32, inter=64),
    #             exact f32 path, tight tolerance vs reference. -------------
    B, S, H, I = 2, 8, 32, 64
    kx, kw, kb, key = jax.random.split(key, 4)
    bound = 1.0 / math.sqrt(H)
    weight_t = jax.random.uniform(kw, (H, I), jnp.float32, -bound, bound)   # W^T
    bias = jax.random.uniform(kb, (I,), jnp.float32, -bound, bound)
    x = jax.random.normal(kx, (B, S, H), jnp.float32)

    out = jax.block_until_ready(
        intermediate_forward(x, weight_t, bias, bf16_matmul=False))
    ref = _reference(x, weight_t, bias)
    assert out.shape == (B, S, I)
    assert jnp.allclose(out, ref, atol=1e-5, rtol=1e-5), "f32 mismatch vs reference"

    # --- Test 2: larger shape exercising the tiled M/N/K grid. --------------
    B2, S2, H2, I2 = 2, 128, 512, 1024
    kx, kw, kb, key = jax.random.split(key, 4)
    bound2 = 1.0 / math.sqrt(H2)
    weight_t2 = jax.random.uniform(kw, (H2, I2), jnp.float32, -bound2, bound2)
    bias2 = jax.random.uniform(kb, (I2,), jnp.float32, -bound2, bound2)
    x2 = jax.random.normal(kx, (B2, S2, H2), jnp.float32)
    ref2 = _reference(x2, weight_t2, bias2)

    # Default (bf16 matmul, f32 accumulation) path, weight cast inside.
    out2 = jax.block_until_ready(intermediate_forward(x2, weight_t2, bias2))
    assert out2.shape == (B2, S2, I2)
    assert jnp.allclose(out2, ref2, atol=5e-2, rtol=5e-2), "bf16 default path mismatch"

    # Same path with the weight pre-cast once outside the hot loop.
    weight_t2_bf16 = weight_t2.astype(jnp.bfloat16)
    out2b = jax.block_until_ready(intermediate_forward(x2, weight_t2_bf16, bias2))
    assert jnp.allclose(out2b, ref2, atol=5e-2, rtol=5e-2), "pre-cast bf16 weight mismatch"

    # Exact f32 path on the tiled shape.
    out2f = jax.block_until_ready(
        intermediate_forward(x2, weight_t2, bias2, bf16_matmul=False))
    assert jnp.allclose(out2f, ref2, atol=1e-3, rtol=1e-3), "tiled f32 mismatch"

    print("KERNEL_OK")
</pallas_src>

<mosaic_0001>
module attributes {stable_mosaic.version = 11 : i64} {
  func.func @_kernel_f32_out(%arg0: i32, %arg1: i32, %arg2: i32, %arg3: memref<16x128xf32, #tpu.memory_space<vmem>>, %arg4: memref<128x128xf32, #tpu.memory_space<vmem>>, %arg5: memref<1x128xf32, #tpu.memory_space<vmem>>, %arg6: memref<16x128xf32, #tpu.memory_space<vmem>>) attributes {dimension_semantics = [#tpu.dimension_semantics<parallel>, #tpu.dimension_semantics<parallel>, #tpu.dimension_semantics<arbitrary>], iteration_bounds = array<i64: 1, 1, 1>, scalar_prefetch = 0 : i64, scratch_operands = 0 : i64, tpu.core_type = #tpu.core_type<tc>, window_params = [{transform_indices = @transform_0, window_bounds = array<i64: 16, 128>}, {transform_indices = @transform_1, window_bounds = array<i64: 128, 128>}, {transform_indices = @transform_2, window_bounds = array<i64: 1, 128>}, {transform_indices = @transform_3, window_bounds = array<i64: 16, 128>}]} {
    %c0 = arith.constant 0 : index
    %c0_0 = arith.constant 0 : index
    %0 = vector.load %arg3[%c0, %c0_0] : memref<16x128xf32, #tpu.memory_space<vmem>>, vector<16x128xf32>
    %c0_1 = arith.constant 0 : index
    %c0_2 = arith.constant 0 : index
    %1 = vector.load %arg4[%c0_1, %c0_2] : memref<128x128xf32, #tpu.memory_space<vmem>>, vector<128x128xf32>
    %cst = arith.constant dense<0.000000e+00> : vector<16x128xf32>
    %2 = tpu.matmul %0, %1, %cst {dimension_numbers = #tpu.dot_dimension_numbers<[1], [0], [0], [1], [0, 0, 1, 1], [], []>} : vector<16x128xf32>, vector<128x128xf32>, vector<16x128xf32> -> vector<16x128xf32>
    %c0_i32 = arith.constant 0 : i32
    %3 = arith.cmpi eq, %arg2, %c0_i32 : i32
    %4 = arith.extui %3 : i1 to i32
    %c0_i32_3 = arith.constant 0 : i32
    %5 = arith.cmpi ne, %4, %c0_i32_3 : i32
    scf.if %5 {
      %c0_8 = arith.constant 0 : index
      %c0_9 = arith.constant 0 : index
      %12 = vector.load %arg6[%c0_8, %c0_9] : memref<16x128xf32, #tpu.memory_space<vmem>>, vector<16x128xf32>
      tpu.vector_store %arg6[%c0_8, %c0_9], %2 {strides = array<i32>} : memref<16x128xf32, #tpu.memory_space<vmem>>, vector<16x128xf32>,
    } else {
    }
    %c0_i32_4 = arith.constant 0 : i32
    %6 = arith.cmpi sgt, %arg2, %c0_i32_4 : i32
    %7 = arith.extui %6 : i1 to i32
    %c0_i32_5 = arith.constant 0 : i32
    %8 = arith.cmpi ne, %7, %c0_i32_5 : i32
    scf.if %8 {
      %c0_8 = arith.constant 0 : index
      %c0_9 = arith.constant 0 : index
      %12 = vector.load %arg6[%c0_8, %c0_9] : memref<16x128xf32, #tpu.memory_space<vmem>>, vector<16x128xf32>
      %13 = arith.addf %12, %2 : vector<16x128xf32>
      %c0_10 = arith.constant 0 : index
      %c0_11 = arith.constant 0 : index
      %14 = vector.load %arg6[%c0_10, %c0_11] : memref<16x128xf32, #tpu.memory_space<vmem>>, vector<16x128xf32>
      tpu.vector_store %arg6[%c0_10, %c0_11], %13 {strides = array<i32>} : memref<16x128xf32, #tpu.memory_space<vmem>>, vector<16x128xf32>,
    } else {
    }
    %c0_i32_6 = arith.constant 0 : i32
    %9 = arith.cmpi eq, %arg2, %c0_i32_6 : i32
    %10 = arith.extui %9 : i1 to i32
    %c0_i32_7 = arith.constant 0 : i32
    %11 = arith.cmpi ne, %10, %c0_i32_7 : i32
    scf.if %11 {
      %c0_8 = arith.constant 0 : index
      %c0_9 = arith.constant 0 : index
      %12 = vector.load %arg6[%c0_8, %c0_9] : memref<16x128xf32, #tpu.memory_space<vmem>>, vector<16x128xf32>
      %c0_10 = arith.constant 0 : index
      %c0_11 = arith.constant 0 : index
      %13 = vector.load %arg5[%c0_10, %c0_11] : memref<1x128xf32, #tpu.memory_space<vmem>>, vector<1x128xf32>
      %14 = vector.broadcast %13 : vector<1x128xf32> to vector<16x128xf32>
      %15 = arith.addf %12, %14 : vector<16x128xf32>
      %cst_12 = arith.constant 5.000000e-01 : f32
      %16 = vector.broadcast %cst_12 : f32 to vector<16x128xf32>
      %17 = arith.mulf %16, %15 : vector<16x128xf32>
      %cst_13 = arith.constant 0.707106769 : f32
      %18 = vector.broadcast %cst_13 : f32 to vector<16x128xf32>
      %19 = arith.mulf %15, %18 : vector<16x128xf32>
      %20 = math.erf %19 : vector<16x128xf32>
      %cst_14 = arith.constant 1.000000e+00 : f32
      %21 = vector.broadcast %cst_14 : f32 to vector<16x128xf32>
      %22 = arith.addf %21, %20 : vector<16x128xf32>
      %23 = arith.mulf %17, %22 : vector<16x128xf32>
      %c0_15 = arith.constant 0 : index
      %c0_16 = arith.constant 0 : index
      %24 = vector.load %arg6[%c0_15, %c0_16] : memref<16x128xf32, #tpu.memory_space<vmem>>, vector<16x128xf32>
      tpu.vector_store %arg6[%c0_15, %c0_16], %23 {strides = array<i32>} : memref<16x128xf32, #tpu.memory_space<vmem>>, vector<16x128xf32>,
    } else {
    }
    return
  }
  func.func @transform_0(%arg0: i32, %arg1: i32, %arg2: i32) -> (i32, i32) {
    %c0_i32 = arith.constant 0 : i32
    return %arg0, %arg2 : i32, i32
  }
  func.func @transform_1(%arg0: i32, %arg1: i32, %arg2: i32) -> (i32, i32) {
    %c0_i32 = arith.constant 0 : i32
    return %arg2, %arg1 : i32, i32
  }
  func.func @transform_2(%arg0: i32, %arg1: i32, %arg2: i32) -> (i32, i32) {
    %c0_i32 = arith.constant 0 : i32
    %c0_i32_0 = arith.constant 0 : i32
    return %c0_i32, %arg1 : i32, i32
  }
  func.func @transform_3(%arg0: i32, %arg1: i32, %arg2: i32) -> (i32, i32) {
    %c0_i32 = arith.constant 0 : i32
    return %arg0, %arg1 : i32, i32
  }
}

</mosaic_0001>

<llo_original>
// kernel: intermediate_forward.1
$region0: #{intermediate_forward.1}
  #allocation0 [shape = 'u32[]', space=smem, size = 0x4, offset = 0x4, fixed_abs, tag = 'smem constant byte address 0x4 - core index']
  #allocation1 [shape = 'u32[144,128]{1,0:T(1,128)}', space=vmem, size = 0x12000, scoped, tag = 'internal scratch']
  %s0 = inlined_call_operand.vmem [shape: f32[16,128], index: 0, kind: input, shape index: {}]
  %s1 = inlined_call_operand.vmem [shape: f32[128,128], index: 1, kind: input, shape index: {}]
  %s2 = inlined_call_operand.vmem [shape: f32[1,128], index: 2, kind: input, shape index: {}]
  %s3 = inlined_call_operand.vmem [shape: f32[16,128], index: 3, kind: output, shape index: {}]
  %s4 = sld [smem:[#allocation0]]
  $region34: #{intermediate_forward.1} parent=0
    _
  %s6 = ssub.s32 1, %s4
  %s7 = scalar_select 0, %s6, %s4
  // Predicated region
  $region2: #{intermediate_forward.1} parent=0 // pred_check
    _
  $region3: #{intermediate_forward.1} parent=0 // pred_check_branch
    %9 = sbr.rel (0) target = $region5
  $region4: #{intermediate_forward.1} parent=0 // pred_region
    _
  $region5: #{intermediate_forward.1} parent=0 // pred_fallthru
    _
  // Predicated region
  $region6: #{intermediate_forward.1} parent=0 // pred_check
    _
  $region7: #{intermediate_forward.1} parent=0 // pred_check_branch
    %11 = sbr.rel (0) target = $region9
  $region8: #{intermediate_forward.1} parent=0 // pred_region
    _
  $region9: #{intermediate_forward.1} parent=0 // pred_fallthru
    _
  // Predicated region
  $region10: #{intermediate_forward.1} parent=0 // pred_check
    _
  $region11: #{intermediate_forward.1} parent=0 // pred_check_branch
    %13 = sbr.rel (0) target = $region13
  $region12: #{intermediate_forward.1} parent=0 // pred_region
    _
  $region13: #{intermediate_forward.1} parent=0 // pred_fallthru
    _
  %v14 = vld [vmem:[%s0] sm:$0xff]
  %v15 = vld [vmem:[%s0 + $0x8] sm:$0xff]
  %v16 = vld [vmem:[%s1] sm:$0xff]
  %v17 = vld [vmem:[%s1 + $0x8] sm:$0xff]
  %v18 = vld [vmem:[%s1 + $0x10] sm:$0xff]
  %v19 = vld [vmem:[%s1 + $0x18] sm:$0xff]
  %v20 = vld [vmem:[%s1 + $0x20] sm:$0xff]
  %v21 = vld [vmem:[%s1 + $0x28] sm:$0xff]
  %v22 = vld [vmem:[%s1 + $0x30] sm:$0xff]
  %v23 = vld [vmem:[%s1 + $0x38] sm:$0xff]
  %v24 = vld [vmem:[%s1 + $0x40] sm:$0xff]
  %v25 = vld [vmem:[%s1 + $0x48] sm:$0xff]
  %v26 = vld [vmem:[%s1 + $0x50] sm:$0xff]
  %v27 = vld [vmem:[%s1 + $0x58] sm:$0xff]
  %v28 = vld [vmem:[%s1 + $0x60] sm:$0xff]
  %v29 = vld [vmem:[%s1 + $0x68] sm:$0xff]
  %v30 = vld [vmem:[%s1 + $0x70] sm:$0xff]
  %v31 = vld [vmem:[%s1 + $0x78] sm:$0xff]
  %32 = vmatprep.subr.mxu0 0.0
  %33 = vmatpush1.msra.mxu0 %v31
  %34 = vmatprep.subr.mxu0 0.0
  %35 = vmatpush1.msra.mxu0 %v30
  %36 = vmatprep.subr.mxu0 0.0
  %37 = vmatpush1.msra.mxu0 %v29
  %38 = vmatprep.subr.mxu0 0.0
  %39 = vmatpush1.msra.mxu0 %v28
  %40 = vmatprep.subr.mxu0 0.0
  %41 = vmatpush1.msra.mxu0 %v27
  %42 = vmatprep.subr.mxu0 0.0
  %43 = vmatpush1.msra.mxu0 %v26
  %44 = vmatprep.subr.mxu0 0.0
  %45 = vmatpush1.msra.mxu0 %v25
  %46 = vmatprep.subr.mxu0 0.0
  %47 = vmatpush1.msra.mxu0 %v24
  %48 = vmatprep.subr.mxu0 0.0
  %49 = vmatpush1.msra.mxu0 %v23
  %50 = vmatprep.subr.mxu0 0.0
  %51 = vmatpush1.msra.mxu0 %v22
  %52 = vmatprep.subr.mxu0 0.0
  %53 = vmatpush1.msra.mxu0 %v21
  %54 = vmatprep.subr.mxu0 0.0
  %55 = vmatpush1.msra.mxu0 %v20
  %56 = vmatprep.subr.mxu0 0.0
  %57 = vmatpush1.msra.mxu0 %v19
  %58 = vmatprep.subr.mxu0 0.0
  %59 = vmatpush1.msra.mxu0 %v18
  %60 = vmatprep.subr.mxu0 0.0
  %61 = vmatpush1.msra.mxu0 %v17
  %62 = vmatprep.subr.mxu0 0.0
  %63 = vmatpush1.msra.mxu0 %v16
  %64 = vmatprep.subr.mxu0 0.0
  %65 = vmatpush2.msra.mxu0 0.0
  %66 = vmatprep.subr.mxu0 0.0
  %67 = vmatpush2.msra.mxu0 0.0
  %68 = vmatprep.subr.mxu0 0.0
  %69 = vmatpush2.msra.mxu0 0.0
  %70 = vmatprep.subr.mxu0 0.0
  %71 = vmatpush2.msra.mxu0 0.0
  %72 = vmatprep.subr.mxu0 0.0
  %73 = vmatpush2.msra.mxu0 0.0
  %74 = vmatprep.subr.mxu0 0.0
  %75 = vmatpush2.msra.mxu0 0.0
  %76 = vmatprep.subr.mxu0 0.0
  %77 = vmatpush2.msra.mxu0 0.0
  %78 = vmatprep.subr.mxu0 0.0
  %79 = vmatpush2.msra.mxu0 0.0
  %80 = vmatprep.subr.mxu0 0.0
  %81 = vmatpush2.msra.mxu0 0.0
  %82 = vmatprep.subr.mxu0 0.0
  %83 = vmatpush2.msra.mxu0 0.0
  %84 = vmatprep.subr.mxu0 0.0
  %85 = vmatpush2.msra.mxu0 0.0
  %86 = vmatprep.subr.mxu0 0.0
  %87 = vmatpush2.msra.mxu0 0.0
  %88 = vmatprep.subr.mxu0 0.0
  %89 = vmatpush2.msra.mxu0 0.0
  %90 = vmatprep.subr.mxu0 0.0
  %91 = vmatpush2.msra.mxu0 0.0
  %92 = vmatprep.subr.mxu0 0.0
  %93 = vmatpush2.msra.mxu0 0.0
  %94 = vmatprep.subr.mxu0 0.0
  %95 = vmatpush2.msra.mxu0 0.0
  %96 = vmatprep.mubr.f32.mxu0 0.0
  %97 = vmatmul.mubr.f32.gmra.mxu0 %v14
  %v98 = vpop.f32.mrf.mxu0
  %v99 = vadd.f32 0.0, %v98
  %v100 = vpop.f32.mrf.mxu0
  %101 = vmatprep.mubr.f32.mxu0 0.0
  %102 = vmatmul.mubr.f32.gmra.mxu0 %v15
  %v103 = vpop.f32.mrf.mxu0
  %v104 = vadd.f32 0.0, %v103
  %v105 = vpop.f32.mrf.mxu0
  %106 = vdwg.mxu0
  %p107 = scmp.eq.s32.totalorder 0, 0
  // Predicated region
  $region14: #{intermediate_forward.1} parent=0 // pred_check
    %p108 = pneg %p107
  $region15: #{intermediate_forward.1} parent=0 // pred_check_branch
    %110 = sbr.rel (%p108) target = $region17
  $region16: #{intermediate_forward.1} parent=0 // pred_region
    %111 = vst [vmem:[%s3] sm:$0xff] %v99
    %112 = vst [vmem:[%s3 + $0x8] sm:$0xff] %v104
  $region17: #{intermediate_forward.1} parent=0 // pred_fallthru
    _
  %p113 = scmp.gt.s32.totalorder 0, 0
  // Predicated region
  $region18: #{intermediate_forward.1} parent=0 // pred_check
    %p114 = pneg %p113
  $region19: #{intermediate_forward.1} parent=0 // pred_check_branch
    %116 = sbr.rel (%p114) target = $region21
  $region20: #{intermediate_forward.1} parent=0 // pred_region
    %v117 = vld [vmem:[%s3] sm:$0xff]
    %v118 = vld [vmem:[%s3 + $0x8] sm:$0xff]
    %v119 = vadd.f32 %v117, %v99
    %v120 = vadd.f32 %v118, %v104
    %121 = vst [vmem:[%s3] sm:$0xff] %v119
    %122 = vst [vmem:[%s3 + $0x8] sm:$0xff] %v120
  $region21: #{intermediate_forward.1} parent=0 // pred_fallthru
    _
  // Predicated region
  $region22: #{intermediate_forward.1} parent=0 // pred_check
    %p123 = pneg %p107
  $region23: #{intermediate_forward.1} parent=0 // pred_check_branch
    %125 = sbr.rel (%p123) target = $region25
  $region24: #{intermediate_forward.1} parent=0 // pred_region
    %v126 = vld [vmem:[%s3] sm:$0xff]
    %v127 = vld [vmem:[%s3 + $0x8] sm:$0xff]
    %v128 = vld [vmem:[%s2] sm:$0x1]
    %v130 = vlaneseq
    %v131 = vshrl.u32 %v130, 7
    %v132 = vsub.s32 0, %v131
    %v133 = vrot.slane %v128, %v132
    %v135 = vadd.f32 %v126, %v133
    %v136 = vadd.f32 %v127, %v133
    %v137 = vmul.f32 %v135, 0.5
    %v138 = vmul.f32 %v136, 0.5
    %v139 = vmul.f32 %v135, 0.70710677
    %v140 = vmul.f32 %v136, 0.70710677
    %v141 = verf.f32.pop %v139
    %v142 = verf.f32.pop %v140
    %v143 = vadd.f32 %v141, 1.0
    %v144 = vadd.f32 %v142, 1.0
    %v145 = vmul.f32 %v137, %v143
    %v146 = vmul.f32 %v138, %v144
    %147 = vst [vmem:[%s3] sm:$0xff] %v145
    %148 = vst [vmem:[%s3 + $0x8] sm:$0xff] %v146
  $region25: #{intermediate_forward.1} parent=0 // pred_fallthru
    _
  // Predicated region
  $region26: #{intermediate_forward.1} parent=0 // pred_check
    _
  $region27: #{intermediate_forward.1} parent=0 // pred_check_branch
    %150 = sbr.rel (0) target = $region29
  $region28: #{intermediate_forward.1} parent=0 // pred_region
    _
  $region29: #{intermediate_forward.1} parent=0 // pred_fallthru
    _
  // Predicated region
  $region30: #{intermediate_forward.1} parent=0 // pred_check
    _
  $region31: #{intermediate_forward.1} parent=0 // pred_check_branch
    %152 = sbr.rel (0) target = $region33
  $region32: #{intermediate_forward.1} parent=0 // pred_region
    _
  $region33: #{intermediate_forward.1} parent=0 // pred_fallthru
    _

</llo_original>
